<compile_context>
chip_gen: v5e
topology: v5e:2x2
jax: 0.10.0
libtpu: 0.0.40
codegen_flags: <defaults>
</compile_context>

<pallas_src>
import functools
import math

import jax
import jax.numpy as jnp
from jax.experimental import pallas as pl
from jax.experimental.pallas import tpu as pltpu

CLAMP_MAX = 20.0   # the module's "ReLU" is Hardtanh(0, 20)


def _clamp(x):
    return jnp.clip(x, 0.0, CLAMP_MAX)


def _largest_divisor_at_most(n, cap):
    cap = int(max(1, min(n, cap)))
    for d in range(cap, 0, -1):
        if n % d == 0:
            return d
    return 1


def _vmem_limit(*shapes):
    b = sum(4 * math.prod(s) for s in shapes)
    return int(min(max(3 * b + (4 << 20), 32 << 20), 100 << 20))


# ----------------------------------------------------------------------------
# pre: conv1 + bn1 + hardtanh, LSTM input projections, shortcut/spx1 partials.
# Row layout everywhere is t-major: row = t * NP + n.
# ----------------------------------------------------------------------------
def pre_kernel(x_ref, w1sp_ref, b1sp_ref, w1x1_ref, b1x1_ref,
               wif_ref, bgf_ref, wib_ref, bgb_ref,
               w3x_ref, wsc_ref, bys_ref,
               gxf_ref, gxb_ref, yp_ref):
    x = x_ref[...]
    sp = _clamp(jnp.dot(x, w1sp_ref[...],
                        preferred_element_type=jnp.float32) + b1sp_ref[...])
    spx1 = _clamp(jnp.dot(x, w1x1_ref[...],
                          preferred_element_type=jnp.float32) + b1x1_ref[...])
    # Input projections written directly to their output slabs (no temp copy).
    gxf_ref[...] = jnp.dot(sp, wif_ref[...],
                           preferred_element_type=jnp.float32) + bgf_ref[...]
    gxb_ref[...] = jnp.dot(sp, wib_ref[...],
                           preferred_element_type=jnp.float32) + bgb_ref[...]
    # Time-parallel part of the epilogue: spx1 branch of conv3 + shortcut +
    # pre-summed (b3 + bsc) bias.
    yp_ref[...] = (jnp.dot(spx1, w3x_ref[...], preferred_element_type=jnp.float32)
                   + jnp.dot(x, wsc_ref[...], preferred_element_type=jnp.float32)
                   + bys_ref[...])


# ----------------------------------------------------------------------------
# rec: bidirectional LSTM over time chunks; h/c carries persist in scratch.
# One block-diagonal recurrent matmul per step covers both directions.
# ----------------------------------------------------------------------------
def rec_kernel(gxf_ref, gxb_ref, whh_ref, hf_ref, hb_ref,
               hcat_s, cf_s, cb_s, *, tc, np_, hdim, gw):
    t = pl.program_id(0)

    @pl.when(t == 0)
    def _():
        hcat_s[...] = jnp.zeros_like(hcat_s)
        cf_s[...] = jnp.zeros_like(cf_s)
        cb_s[...] = jnp.zeros_like(cb_s)

    whh = whh_ref[...]                       # (2H, 8H) block-diagonal

    def cell(g, c):
        i_g = jax.nn.sigmoid(g[:, 0 * hdim:1 * hdim])
        f_g = jax.nn.sigmoid(g[:, 1 * hdim:2 * hdim])
        c_g = jnp.tanh(g[:, 2 * hdim:3 * hdim])
        o_g = jax.nn.sigmoid(g[:, 3 * hdim:4 * hdim])
        c = f_g * c + i_g * c_g
        return o_g * jnp.tanh(c), c

    def body(s, carry):
        hcat, cf, cb = carry
        rf = pl.multiple_of(s * np_, np_)             # fwd local time s
        rb = pl.multiple_of((tc - 1 - s) * np_, np_)  # bwd local time tc-1-s
        grec = jnp.dot(hcat, whh, preferred_element_type=jnp.float32)  # (NP, 8H)
        gf = gxf_ref[pl.ds(rf, np_), :] + grec[:, :gw]
        gb = gxb_ref[pl.ds(rb, np_), :] + grec[:, gw:]
        hf, cf = cell(gf, cf)
        hb, cb = cell(gb, cb)
        hf_ref[pl.ds(rf, np_), :] = hf
        hb_ref[pl.ds(rb, np_), :] = hb
        return (jnp.concatenate([hf, hb], axis=1), cf, cb)

    carry0 = (hcat_s[...], cf_s[...], cb_s[...])
    unroll = 2 if (tc % 2 == 0 and tc >= 2) else 1
    hcat, cf, cb = jax.lax.fori_loop(0, tc, body, carry0, unroll=unroll)
    hcat_s[...] = hcat
    cf_s[...] = cf
    cb_s[...] = cb


# ----------------------------------------------------------------------------
# post: bn + hardtanh on LSTM output, conv3 of the LSTM halves, final clamp.
# ----------------------------------------------------------------------------
def post_kernel(hf_ref, hb_ref, yp_ref,
                sspf_ref, bspf_ref, sspb_ref, bspb_ref,
                w3f_ref, w3b_ref, out_ref):
    spf = _clamp(hf_ref[...] * sspf_ref[...] + bspf_ref[...])
    spb = _clamp(hb_ref[...] * sspb_ref[...] + bspb_ref[...])
    y = (jnp.dot(spf, w3f_ref[...], preferred_element_type=jnp.float32)
         + jnp.dot(spb, w3b_ref[...], preferred_element_type=jnp.float32)
         + yp_ref[...])
    out_ref[...] = _clamp(y).astype(out_ref.dtype)


# ----------------------------------------------------------------------------
# Wrapper: folds BN into weights, builds the block-diagonal recurrent weight,
# handles NCT <-> t-major layout, batch padding and the stride subsampling.
# ----------------------------------------------------------------------------
def res2net_block_lstm(x_nct, p, *, width, stride=1,
                       rec_time_chunk=None, mm_time_chunk=None):
    f32 = jnp.float32
    H = width // 2
    GW = 4 * H                                       # per-direction gate width
    out_ch = p['w3'].shape[1]

    # Conv1d with kernel_size=1 and stride s == subsample time then 1x1 conv.
    xs = x_nct[:, :, ::stride]
    N, Cin, T = xs.shape
    NP = ((N + 7) // 8) * 8                          # pad batch to sublane tile
    if NP != N:
        xs = jnp.pad(xs, ((0, NP - N), (0, 0), (0, 0)))
    TN = T * NP
    x_flat = jnp.transpose(xs, (2, 0, 1)).reshape(TN, Cin).astype(f32)

    # ---- fold BN scales into conv weights (inference mode) ----
    w1_eff = p['w1'].astype(f32) * p['s1']           # (Cin, 2*width)
    w1sp, w1x1 = w1_eff[:, :width], w1_eff[:, width:]
    b1sp, b1x1 = p['b1'][:, :width].astype(f32), p['b1'][:, width:].astype(f32)

    wif, wib = p['wif'].astype(f32), p['wib'].astype(f32)   # (width, 4H)
    bgf, bgb = p['bf'].astype(f32), p['bb'].astype(f32)     # (1, 4H)

    # Block-diagonal fused recurrent weight: [hf|hb] @ whh -> [fwd gates|bwd gates]
    whh = jnp.zeros((2 * H, 2 * GW), f32)
    whh = whh.at[:H, :GW].set(p['whf'].astype(f32))
    whh = whh.at[H:, GW:].set(p['whb'].astype(f32))

    sspf, bspf = p['ssp'][:, :H].astype(f32), p['bsp'][:, :H].astype(f32)
    sspb, bspb = p['ssp'][:, H:].astype(f32), p['bsp'][:, H:].astype(f32)

    w3_eff = p['w3'].astype(f32) * p['s3']           # (2*width, out_ch)
    w3f, w3b, w3x = w3_eff[:H], w3_eff[H:width], w3_eff[width:]
    wsc = p['wsc'].astype(f32) * p['ssc']            # (Cin, out_ch)
    bys = (p['b3'] + p['bsc']).astype(f32)           # pre-summed bias

    # ---- chunk selection (VMEM scales with the chunk, not T*N) ----
    row_bytes_mm = 4 * NP * (Cin + 2 * GW + 2 * out_ch + 2 * width + 2 * H)
    if mm_time_chunk is None:
        mm_time_chunk = max(1, (2 << 20) // max(row_bytes_mm, 1))
    mm_tc = _largest_divisor_at_most(T, mm_time_chunk)
    RC = mm_tc * NP
    n_mm = T // mm_tc

    row_bytes_rec = 4 * NP * (2 * GW + 2 * H)
    if rec_time_chunk is None:
        rec_time_chunk = max(1, (2 << 20) // max(row_bytes_rec, 1))
    rec_tc = _largest_divisor_at_most(T, rec_time_chunk)
    n_rec = T // rec_tc
    rec_rows = rec_tc * NP

    # ------------------------------ pre ------------------------------
    pre_weights = (w1sp, b1sp, w1x1, b1x1, wif, bgf, wib, bgb, w3x, wsc, bys)
    pre_in_specs = ([pl.BlockSpec((RC, Cin), lambda i: (i, 0))]
                    + [pl.BlockSpec(w.shape, lambda i: (0, 0)) for w in pre_weights])
    pre_out_specs = [pl.BlockSpec((RC, GW), lambda i: (i, 0)),
                     pl.BlockSpec((RC, GW), lambda i: (i, 0)),
                     pl.BlockSpec((RC, out_ch), lambda i: (i, 0))]
    pre_cost = pl.CostEstimate(
        flops=2 * TN * (Cin * 2 * width + width * 2 * GW + width * out_ch + Cin * out_ch),
        transcendentals=0,
        bytes_accessed=4 * (TN * (Cin + 2 * GW + out_ch)
                            + sum(math.prod(w.shape) for w in pre_weights)))
    gxf, gxb, yp = pl.pallas_call(
        pre_kernel,
        out_shape=(jax.ShapeDtypeStruct((TN, GW), f32),
                   jax.ShapeDtypeStruct((TN, GW), f32),
                   jax.ShapeDtypeStruct((TN, out_ch), f32)),
        grid_spec=pltpu.PrefetchScalarGridSpec(
            num_scalar_prefetch=0, grid=(n_mm,),
            in_specs=pre_in_specs, out_specs=pre_out_specs),
        compiler_params=pltpu.CompilerParams(
            dimension_semantics=("parallel",),
            vmem_limit_bytes=_vmem_limit((RC, Cin), (RC, GW), (RC, GW), (RC, out_ch),
                                         *[w.shape for w in pre_weights])),
        cost_estimate=pre_cost,
    )(x_flat, *pre_weights)

    # ------------------------------ rec ------------------------------
    rec_kern = functools.partial(rec_kernel, tc=rec_tc, np_=NP, hdim=H, gw=GW)
    rec_cost = pl.CostEstimate(
        flops=2 * T * NP * (2 * H) * (2 * GW),
        transcendentals=10 * T * NP * H,
        bytes_accessed=4 * T * NP * (2 * GW + 2 * H))
    hf, hb = pl.pallas_call(
        rec_kern,
        out_shape=(jax.ShapeDtypeStruct((TN, H), f32),
                   jax.ShapeDtypeStruct((TN, H), f32)),
        grid_spec=pltpu.PrefetchScalarGridSpec(
            num_scalar_prefetch=0, grid=(n_rec,),
            in_specs=[pl.BlockSpec((rec_rows, GW), lambda t: (t, 0)),
                      pl.BlockSpec((rec_rows, GW), lambda t: (n_rec - 1 - t, 0)),
                      pl.BlockSpec(whh.shape, lambda t: (0, 0))],
            out_specs=[pl.BlockSpec((rec_rows, H), lambda t: (t, 0)),
                       pl.BlockSpec((rec_rows, H), lambda t: (n_rec - 1 - t, 0))],
            scratch_shapes=[pltpu.VMEM((NP, 2 * H), f32),   # hcat carry
                            pltpu.VMEM((NP, H), f32),        # cf carry
                            pltpu.VMEM((NP, H), f32)]),      # cb carry
        compiler_params=pltpu.CompilerParams(
            dimension_semantics=("arbitrary",),
            vmem_limit_bytes=_vmem_limit((rec_rows, GW), (rec_rows, GW),
                                         (rec_rows, H), (rec_rows, H), whh.shape)),
        cost_estimate=rec_cost,
    )(gxf, gxb, whh)

    # ------------------------------ post -----------------------------
    post_weights = (sspf, bspf, sspb, bspb, w3f, w3b)
    post_in_specs = ([pl.BlockSpec((RC, H), lambda i: (i, 0)),
                      pl.BlockSpec((RC, H), lambda i: (i, 0)),
                      pl.BlockSpec((RC, out_ch), lambda i: (i, 0))]
                     + [pl.BlockSpec(w.shape, lambda i: (0, 0)) for w in post_weights])
    post_cost = pl.CostEstimate(
        flops=2 * TN * 2 * H * out_ch,
        transcendentals=0,
        bytes_accessed=4 * TN * (2 * H + 2 * out_ch))
    out = pl.pallas_call(
        post_kernel,
        out_shape=jax.ShapeDtypeStruct((TN, out_ch), f32),
        grid_spec=pltpu.PrefetchScalarGridSpec(
            num_scalar_prefetch=0, grid=(n_mm,),
            in_specs=post_in_specs,
            out_specs=pl.BlockSpec((RC, out_ch), lambda i: (i, 0))),
        compiler_params=pltpu.CompilerParams(
            dimension_semantics=("parallel",),
            vmem_limit_bytes=_vmem_limit((RC, H), (RC, H), (RC, out_ch), (RC, out_ch),
                                         *[w.shape for w in post_weights])),
        cost_estimate=post_cost,
    )(hf, hb, yp, *post_weights)

    out = out.reshape(T, NP, out_ch)[:, :N]
    return jnp.transpose(out, (1, 2, 0))             # (N, out_ch, T)


# ----------------------------------------------------------------------------
# Deterministic synthetic parameters (shapes follow the module's __init__).
# ----------------------------------------------------------------------------
def init_params(key, in_planes, planes, baseWidth=32, scale=2):
    assert scale == 2, "kernel implements the module's default scale=2"
    expansion = 2
    width = int(math.floor(planes * (baseWidth / 64.0)))
    H = width // 2
    ws = width * scale
    out_ch = planes * expansion
    eps = 1e-5

    ks = jax.random.split(key, 17)

    def nrm(k, shape, s=0.1):
        return jax.random.normal(k, shape, jnp.float32) * s

    def fold_bn(kg, kb, C):
        gamma = 1.0 + 0.1 * jax.random.normal(kg, (C,), jnp.float32)
        beta = 0.1 * jax.random.normal(kb, (C,), jnp.float32)
        mean = jnp.zeros((C,), jnp.float32)
        var = jnp.ones((C,), jnp.float32)
        s = gamma / jnp.sqrt(var + eps)
        b = beta - mean * s
        return s.reshape(1, C), b.reshape(1, C)

    p = {}
    p['w1'] = nrm(ks[0], (in_planes, ws))                  # conv1 (Cin, 2*width)
    p['s1'], p['b1'] = fold_bn(ks[1], ks[2], ws)
    # LSTM (gate order i, f, g, o): x @ W_ih + h @ W_hh + (b_ih + b_hh)
    p['wif'] = nrm(ks[3], (width, 4 * H))
    p['whf'] = nrm(ks[4], (H, 4 * H))
    p['bf'] = nrm(ks[5], (1, 4 * H))
    p['wib'] = nrm(ks[6], (width, 4 * H))
    p['whb'] = nrm(ks[7], (H, 4 * H))
    p['bb'] = nrm(ks[8], (1, 4 * H))
    p['ssp'], p['bsp'] = fold_bn(ks[9], ks[10], width)
    p['w3'] = nrm(ks[11], (ws, out_ch))
    p['s3'], p['b3'] = fold_bn(ks[12], ks[13], out_ch)
    p['wsc'] = nrm(ks[14], (in_planes, out_ch))
    p['ssc'], p['bsc'] = fold_bn(ks[15], ks[16], out_ch)
    return p, width, H


# ----------------------------------------------------------------------------
# Pure-JAX reference (same folded-BN semantics) for a correctness check.
# ----------------------------------------------------------------------------
def reference_forward(x_nct, p, *, width, stride=1):
    H = width // 2
    xs = x_nct[:, :, ::stride]
    x = jnp.transpose(xs, (0, 2, 1)).astype(jnp.float32)      # (N, T, Cin)
    N, T, _ = x.shape

    h1 = jnp.einsum('ntc,cd->ntd', x, p['w1'])
    h1 = jnp.clip(h1 * p['s1'] + p['b1'], 0.0, CLAMP_MAX)
    sp, spx1 = h1[..., :width], h1[..., width:]

    gxf = jnp.einsum('ntc,cd->ntd', sp, p['wif']) + p['bf']
    gxb = jnp.einsum('ntc,cd->ntd', sp, p['wib']) + p['bb']

    def run(gx, whh, reverse):
        h = jnp.zeros((N, H), jnp.float32)
        c = jnp.zeros((N, H), jnp.float32)
        outs = [None] * T
        order = range(T - 1, -1, -1) if reverse else range(T)
        for t in order:
            g = gx[:, t, :] + h @ whh
            i_g = jax.nn.sigmoid(g[:, :H])
            f_g = jax.nn.sigmoid(g[:, H:2 * H])
            c_g = jnp.tanh(g[:, 2 * H:3 * H])
            o_g = jax.nn.sigmoid(g[:, 3 * H:])
            c = f_g * c + i_g * c_g
            h = o_g * jnp.tanh(c)
            outs[t] = h
        return jnp.stack(outs, axis=1)

    lstm = jnp.concatenate([run(gxf, p['whf'], False),
                            run(gxb, p['whb'], True)], axis=-1)
    spo = jnp.clip(lstm * p['ssp'] + p['bsp'], 0.0, CLAMP_MAX)
    cat = jnp.concatenate([spo, spx1], axis=-1)
    y = jnp.einsum('ntc,cd->ntd', cat, p['w3']) * p['s3'] + p['b3']
    res = jnp.einsum('ntc,cd->ntd', x, p['wsc']) * p['ssc'] + p['bsc']
    out = jnp.clip(y + res, 0.0, CLAMP_MAX)
    return jnp.transpose(out, (0, 2, 1))


if __name__ == "__main__":
    # Module config: in_planes=16, planes=16, stride=1, baseWidth=32, scale=2
    # -> width=8, hidden=4, conv1 out=16, block out = planes*expansion = 32.
    in_planes, planes = 16, 16
    N, T = 2, 16

    key = jax.random.PRNGKey(0)
    kx, kp = jax.random.split(key)
    x = jax.random.normal(kx, (N, in_planes, T), jnp.float32)   # NCT, like PyTorch

    params, width, H = init_params(kp, in_planes, planes)

    # Chunk sizes chosen so the test exercises multi-chunk pipelining
    # (2 grid steps for pre/post and for the recurrence carry).
    out = res2net_block_lstm(x, params, width=width, stride=1,
                             rec_time_chunk=8, mm_time_chunk=8)
    out = jax.block_until_ready(out)

    ref = reference_forward(x, params, width=width, stride=1)
    assert out.shape == (N, planes * 2, T), out.shape
    assert jnp.allclose(out, ref, atol=5e-3, rtol=5e-3), \
        float(jnp.max(jnp.abs(out - ref)))

    print("KERNEL_OK")
</pallas_src>

<mosaic_0001>
module attributes {stable_mosaic.version = 11 : i64} {
  func.func @pre_kernel(%arg0: i32, %arg1: memref<64x16xf32, #tpu.memory_space<vmem>>, %arg2: memref<16x8xf32, #tpu.memory_space<vmem>>, %arg3: memref<1x8xf32, #tpu.memory_space<vmem>>, %arg4: memref<16x8xf32, #tpu.memory_space<vmem>>, %arg5: memref<1x8xf32, #tpu.memory_space<vmem>>, %arg6: memref<8x16xf32, #tpu.memory_space<vmem>>, %arg7: memref<1x16xf32, #tpu.memory_space<vmem>>, %arg8: memref<8x16xf32, #tpu.memory_space<vmem>>, %arg9: memref<1x16xf32, #tpu.memory_space<vmem>>, %arg10: memref<8x32xf32, #tpu.memory_space<vmem>>, %arg11: memref<16x32xf32, #tpu.memory_space<vmem>>, %arg12: memref<1x32xf32, #tpu.memory_space<vmem>>, %arg13: memref<64x16xf32, #tpu.memory_space<vmem>>, %arg14: memref<64x16xf32, #tpu.memory_space<vmem>>, %arg15: memref<64x32xf32, #tpu.memory_space<vmem>>) attributes {dimension_semantics = [#tpu.dimension_semantics<parallel>], iteration_bounds = array<i64: 2>, scalar_prefetch = 0 : i64, scratch_operands = 0 : i64, tpu.core_type = #tpu.core_type<tc>, window_params = [{transform_indices = @transform_0, window_bounds = array<i64: 64, 16>}, {pipeline_mode = #tpu.pipeline_mode<synchronous>, transform_indices = @transform_1, window_bounds = array<i64: 16, 8>}, {pipeline_mode = #tpu.pipeline_mode<synchronous>, transform_indices = @transform_2, window_bounds = array<i64: 1, 8>}, {pipeline_mode = #tpu.pipeline_mode<synchronous>, transform_indices = @transform_3, window_bounds = array<i64: 16, 8>}, {pipeline_mode = #tpu.pipeline_mode<synchronous>, transform_indices = @transform_4, window_bounds = array<i64: 1, 8>}, {pipeline_mode = #tpu.pipeline_mode<synchronous>, transform_indices = @transform_5, window_bounds = array<i64: 8, 16>}, {pipeline_mode = #tpu.pipeline_mode<synchronous>, transform_indices = @transform_6, window_bounds = array<i64: 1, 16>}, {pipeline_mode = #tpu.pipeline_mode<synchronous>, transform_indices = @transform_7, window_bounds = array<i64: 8, 16>}, {pipeline_mode = #tpu.pipeline_mode<synchronous>, transform_indices = @transform_8, window_bounds = array<i64: 1, 16>}, {pipeline_mode = #tpu.pipeline_mode<synchronous>, transform_indices = @transform_9, window_bounds = array<i64: 8, 32>}, {pipeline_mode = #tpu.pipeline_mode<synchronous>, transform_indices = @transform_10, window_bounds = array<i64: 16, 32>}, {pipeline_mode = #tpu.pipeline_mode<synchronous>, transform_indices = @transform_11, window_bounds = array<i64: 1, 32>}, {transform_indices = @transform_12, window_bounds = array<i64: 64, 16>}, {transform_indices = @transform_13, window_bounds = array<i64: 64, 16>}, {transform_indices = @transform_14, window_bounds = array<i64: 64, 32>}]} {
    %c0 = arith.constant 0 : index
    %c0_0 = arith.constant 0 : index
    %0 = vector.load %arg1[%c0, %c0_0] : memref<64x16xf32, #tpu.memory_space<vmem>>, vector<64x16xf32>
    %c0_1 = arith.constant 0 : index
    %c0_2 = arith.constant 0 : index
    %1 = vector.load %arg2[%c0_1, %c0_2] : memref<16x8xf32, #tpu.memory_space<vmem>>, vector<16x8xf32>
    %cst = arith.constant dense<0.000000e+00> : vector<64x8xf32>
    %2 = tpu.matmul %0, %1, %cst {dimension_numbers = #tpu.dot_dimension_numbers<[1], [0], [0], [1], [0, 0, 1, 1], [], []>} : vector<64x16xf32>, vector<16x8xf32>, vector<64x8xf32> -> vector<64x8xf32>
    %c0_3 = arith.constant 0 : index
    %c0_4 = arith.constant 0 : index
    %3 = vector.load %arg3[%c0_3, %c0_4] : memref<1x8xf32, #tpu.memory_space<vmem>>, vector<1x8xf32>
    %4 = vector.broadcast %3 : vector<1x8xf32> to vector<64x8xf32>
    %5 = arith.addf %2, %4 : vector<64x8xf32>
    %cst_5 = arith.constant 0.000000e+00 : f32
    %cst_6 = arith.constant 2.000000e+01 : f32
    %6 = vector.broadcast %cst_5 : f32 to vector<64x8xf32>
    %7 = arith.maximumf %6, %5 : vector<64x8xf32>
    %8 = vector.broadcast %cst_6 : f32 to vector<64x8xf32>
    %9 = arith.minimumf %8, %7 : vector<64x8xf32>
    %c0_7 = arith.constant 0 : index
    %c0_8 = arith.constant 0 : index
    %10 = vector.load %arg4[%c0_7, %c0_8] : memref<16x8xf32, #tpu.memory_space<vmem>>, vector<16x8xf32>
    %cst_9 = arith.constant dense<0.000000e+00> : vector<64x8xf32>
    %11 = tpu.matmul %0, %10, %cst_9 {dimension_numbers = #tpu.dot_dimension_numbers<[1], [0], [0], [1], [0, 0, 1, 1], [], []>} : vector<64x16xf32>, vector<16x8xf32>, vector<64x8xf32> -> vector<64x8xf32>
    %c0_10 = arith.constant 0 : index
    %c0_11 = arith.constant 0 : index
    %12 = vector.load %arg5[%c0_10, %c0_11] : memref<1x8xf32, #tpu.memory_space<vmem>>, vector<1x8xf32>
    %13 = vector.broadcast %12 : vector<1x8xf32> to vector<64x8xf32>
    %14 = arith.addf %11, %13 : vector<64x8xf32>
    %cst_12 = arith.constant 0.000000e+00 : f32
    %cst_13 = arith.constant 2.000000e+01 : f32
    %15 = vector.broadcast %cst_12 : f32 to vector<64x8xf32>
    %16 = arith.maximumf %15, %14 : vector<64x8xf32>
    %17 = vector.broadcast %cst_13 : f32 to vector<64x8xf32>
    %18 = arith.minimumf %17, %16 : vector<64x8xf32>
    %c0_14 = arith.constant 0 : index
    %c0_15 = arith.constant 0 : index
    %19 = vector.load %arg6[%c0_14, %c0_15] : memref<8x16xf32, #tpu.memory_space<vmem>>, vector<8x16xf32>
    %cst_16 = arith.constant dense<0.000000e+00> : vector<64x16xf32>
    %20 = tpu.matmul %9, %19, %cst_16 {dimension_numbers = #tpu.dot_dimension_numbers<[1], [0], [0], [1], [0, 0, 1, 1], [], []>} : vector<64x8xf32>, vector<8x16xf32>, vector<64x16xf32> -> vector<64x16xf32>
    %c0_17 = arith.constant 0 : index
    %c0_18 = arith.constant 0 : index
    %21 = vector.load %arg7[%c0_17, %c0_18] : memref<1x16xf32, #tpu.memory_space<vmem>>, vector<1x16xf32>
    %22 = vector.broadcast %21 : vector<1x16xf32> to vector<64x16xf32>
    %23 = arith.addf %20, %22 : vector<64x16xf32>
    %c0_19 = arith.constant 0 : index
    %c0_20 = arith.constant 0 : index
    %24 = vector.load %arg13[%c0_19, %c0_20] : memref<64x16xf32, #tpu.memory_space<vmem>>, vector<64x16xf32>
    tpu.vector_store %arg13[%c0_19, %c0_20], %23 {strides = array<i32>} : memref<64x16xf32, #tpu.memory_space<vmem>>, vector<64x16xf32>,
    %c0_21 = arith.constant 0 : index
    %c0_22 = arith.constant 0 : index
    %25 = vector.load %arg8[%c0_21, %c0_22] : memref<8x16xf32, #tpu.memory_space<vmem>>, vector<8x16xf32>
    %cst_23 = arith.constant dense<0.000000e+00> : vector<64x16xf32>
    %26 = tpu.matmul %9, %25, %cst_23 {dimension_numbers = #tpu.dot_dimension_numbers<[1], [0], [0], [1], [0, 0, 1, 1], [], []>} : vector<64x8xf32>, vector<8x16xf32>, vector<64x16xf32> -> vector<64x16xf32>
    %c0_24 = arith.constant 0 : index
    %c0_25 = arith.constant 0 : index
    %27 = vector.load %arg9[%c0_24, %c0_25] : memref<1x16xf32, #tpu.memory_space<vmem>>, vector<1x16xf32>
    %28 = vector.broadcast %27 : vector<1x16xf32> to vector<64x16xf32>
    %29 = arith.addf %26, %28 : vector<64x16xf32>
    %c0_26 = arith.constant 0 : index
    %c0_27 = arith.constant 0 : index
    %30 = vector.load %arg14[%c0_26, %c0_27] : memref<64x16xf32, #tpu.memory_space<vmem>>, vector<64x16xf32>
    tpu.vector_store %arg14[%c0_26, %c0_27], %29 {strides = array<i32>} : memref<64x16xf32, #tpu.memory_space<vmem>>, vector<64x16xf32>,
    %c0_28 = arith.constant 0 : index
    %c0_29 = arith.constant 0 : index
    %31 = vector.load %arg10[%c0_28, %c0_29] : memref<8x32xf32, #tpu.memory_space<vmem>>, vector<8x32xf32>
    %cst_30 = arith.constant dense<0.000000e+00> : vector<64x32xf32>
    %32 = tpu.matmul %18, %31, %cst_30 {dimension_numbers = #tpu.dot_dimension_numbers<[1], [0], [0], [1], [0, 0, 1, 1], [], []>} : vector<64x8xf32>, vector<8x32xf32>, vector<64x32xf32> -> vector<64x32xf32>
    %c0_31 = arith.constant 0 : index
    %c0_32 = arith.constant 0 : index
    %33 = vector.load %arg11[%c0_31, %c0_32] : memref<16x32xf32, #tpu.memory_space<vmem>>, vector<16x32xf32>
    %cst_33 = arith.constant dense<0.000000e+00> : vector<64x32xf32>
    %34 = tpu.matmul %0, %33, %cst_33 {dimension_numbers = #tpu.dot_dimension_numbers<[1], [0], [0], [1], [0, 0, 1, 1], [], []>} : vector<64x16xf32>, vector<16x32xf32>, vector<64x32xf32> -> vector<64x32xf32>
    %35 = arith.addf %32, %34 : vector<64x32xf32>
    %c0_34 = arith.constant 0 : index
    %c0_35 = arith.constant 0 : index
    %36 = vector.load %arg12[%c0_34, %c0_35] : memref<1x32xf32, #tpu.memory_space<vmem>>, vector<1x32xf32>
    %37 = vector.broadcast %36 : vector<1x32xf32> to vector<64x32xf32>
    %38 = arith.addf %35, %37 : vector<64x32xf32>
    %c0_36 = arith.constant 0 : index
    %c0_37 = arith.constant 0 : index
    %39 = vector.load %arg15[%c0_36, %c0_37] : memref<64x32xf32, #tpu.memory_space<vmem>>, vector<64x32xf32>
    tpu.vector_store %arg15[%c0_36, %c0_37], %38 {strides = array<i32>} : memref<64x32xf32, #tpu.memory_space<vmem>>, vector<64x32xf32>,
    return
  }
  func.func @transform_0(%arg0: i32) -> (i32, i32) {
    %c0_i32 = arith.constant 0 : i32
    %c0_i32_0 = arith.constant 0 : i32
    return %arg0, %c0_i32 : i32, i32
  }
  func.func @transform_1(%arg0: i32) -> (i32, i32) {
    %c0_i32 = arith.constant 0 : i32
    %c0_i32_0 = arith.constant 0 : i32
    %c0_i32_1 = arith.constant 0 : i32
    return %c0_i32, %c0_i32_0 : i32, i32
  }
  func.func @transform_2(%arg0: i32) -> (i32, i32) {
    %c0_i32 = arith.constant 0 : i32
    %c0_i32_0 = arith.constant 0 : i32
    %c0_i32_1 = arith.constant 0 : i32
    return %c0_i32, %c0_i32_0 : i32, i32
  }
  func.func @transform_3(%arg0: i32) -> (i32, i32) {
    %c0_i32 = arith.constant 0 : i32
    %c0_i32_0 = arith.constant 0 : i32
    %c0_i32_1 = arith.constant 0 : i32
    return %c0_i32, %c0_i32_0 : i32, i32
  }
  func.func @transform_4(%arg0: i32) -> (i32, i32) {
    %c0_i32 = arith.constant 0 : i32
    %c0_i32_0 = arith.constant 0 : i32
    %c0_i32_1 = arith.constant 0 : i32
    return %c0_i32, %c0_i32_0 : i32, i32
  }
  func.func @transform_5(%arg0: i32) -> (i32, i32) {
    %c0_i32 = arith.constant 0 : i32
    %c0_i32_0 = arith.constant 0 : i32
    %c0_i32_1 = arith.constant 0 : i32
    return %c0_i32, %c0_i32_0 : i32, i32
  }
  func.func @transform_6(%arg0: i32) -> (i32, i32) {
    %c0_i32 = arith.constant 0 : i32
    %c0_i32_0 = arith.constant 0 : i32
    %c0_i32_1 = arith.constant 0 : i32
    return %c0_i32, %c0_i32_0 : i32, i32
  }
  func.func @transform_7(%arg0: i32) -> (i32, i32) {
    %c0_i32 = arith.constant 0 : i32
    %c0_i32_0 = arith.constant 0 : i32
    %c0_i32_1 = arith.constant 0 : i32
    return %c0_i32, %c0_i32_0 : i32, i32
  }
  func.func @transform_8(%arg0: i32) -> (i32, i32) {
    %c0_i32 = arith.constant 0 : i32
    %c0_i32_0 = arith.constant 0 : i32
    %c0_i32_1 = arith.constant 0 : i32
    return %c0_i32, %c0_i32_0 : i32, i32
  }
  func.func @transform_9(%arg0: i32) -> (i32, i32) {
    %c0_i32 = arith.constant 0 : i32
    %c0_i32_0 = arith.constant 0 : i32
    %c0_i32_1 = arith.constant 0 : i32
    return %c0_i32, %c0_i32_0 : i32, i32
  }
  func.func @transform_10(%arg0: i32) -> (i32, i32) {
    %c0_i32 = arith.constant 0 : i32
    %c0_i32_0 = arith.constant 0 : i32
    %c0_i32_1 = arith.constant 0 : i32
    return %c0_i32, %c0_i32_0 : i32, i32
  }
  func.func @transform_11(%arg0: i32) -> (i32, i32) {
    %c0_i32 = arith.constant 0 : i32
    %c0_i32_0 = arith.constant 0 : i32
    %c0_i32_1 = arith.constant 0 : i32
    return %c0_i32, %c0_i32_0 : i32, i32
  }
  func.func @transform_12(%arg0: i32) -> (i32, i32) {
    %c0_i32 = arith.constant 0 : i32
    %c0_i32_0 = arith.constant 0 : i32
    return %arg0, %c0_i32 : i32, i32
  }
  func.func @transform_13(%arg0: i32) -> (i32, i32) {
    %c0_i32 = arith.constant 0 : i32
    %c0_i32_0 = arith.constant 0 : i32
    return %arg0, %c0_i32 : i32, i32
  }
  func.func @transform_14(%arg0: i32) -> (i32, i32) {
    %c0_i32 = arith.constant 0 : i32
    %c0_i32_0 = arith.constant 0 : i32
    return %arg0, %c0_i32 : i32, i32
  }
}

</mosaic_0001>

<llo_original>
// kernel: tpu_custom_call.1
$region0: #{tpu_custom_call.1}
  #allocation0 [shape = 'u32[]', space=smem, size = 0x4, offset = 0x4, fixed_abs, tag = 'smem constant byte address 0x4 - core index']
  #allocation1 [shape = 'u32[72,128]{1,0:T(1,128)}', space=vmem, size = 0x9000, scoped, tag = 'internal scratch']
  %s0 = inlined_call_operand.vmem [shape: f32[128,16], index: 0, kind: input, shape index: {}]
  %s1 = inlined_call_operand.vmem [shape: f32[16,8], index: 1, kind: input, shape index: {}]
  %s2 = inlined_call_operand.vmem [shape: f32[1,8], index: 2, kind: input, shape index: {}]
  %s3 = inlined_call_operand.vmem [shape: f32[16,8], index: 3, kind: input, shape index: {}]
  %s4 = inlined_call_operand.vmem [shape: f32[1,8], index: 4, kind: input, shape index: {}]
  %s5 = inlined_call_operand.vmem [shape: f32[8,16], index: 5, kind: input, shape index: {}]
  %s6 = inlined_call_operand.vmem [shape: f32[1,16], index: 6, kind: input, shape index: {}]
  %s7 = inlined_call_operand.vmem [shape: f32[8,16], index: 7, kind: input, shape index: {}]
  %s8 = inlined_call_operand.vmem [shape: f32[1,16], index: 8, kind: input, shape index: {}]
  %s9 = inlined_call_operand.vmem [shape: f32[8,32], index: 9, kind: input, shape index: {}]
  %s10 = inlined_call_operand.vmem [shape: f32[16,32], index: 10, kind: input, shape index: {}]
  %s11 = inlined_call_operand.vmem [shape: f32[1,32], index: 11, kind: input, shape index: {}]
  %s12 = inlined_call_operand.vmem [shape: f32[128,16], index: 12, kind: output, shape index: {0}]
  %s13 = inlined_call_operand.vmem [shape: f32[128,16], index: 13, kind: output, shape index: {1}]
  %s14 = inlined_call_operand.vmem [shape: f32[128,32], index: 14, kind: output, shape index: {2}]
  %15 = xla_tuple %s12, %s13, %s14
  %s16 = sld [smem:[#allocation0]]
  $region97: #{tpu_custom_call.1} parent=0
    _
  %s18 = ssub.s32 1, %s16
  %s19 = scalar_select 0, %s18, %s16
  loop: start=0, step=1, limit=4
  $region2: #{tpu_custom_call.1} parent=0 // loop_pre_header
    _
  $region3: #{tpu_custom_call.1} parent=0 // loop_header
    %s21 = sphi 0, %s25
    %p22 = scmp.ge.s32.totalorder %s21, 4
    %s31 = sphi 0, %s33
    %s34 = sphi 0, %s31
    %s35 = sphi 0, %s34
    %s51 = sphi 0, %s35
    %s55 = sphi 0, %s55
    %s57 = sphi 0, %s55
    %s58 = sphi 0, %s57
    %s72 = sphi 0, %s58
    %s76 = sphi 0, %s76
    %s78 = sphi 0, %s76
    %s79 = sphi 0, %s78
    %s93 = sphi 0, %s79
    %s97 = sphi 0, %s97
    %s99 = sphi 0, %s97
    %s100 = sphi 0, %s99
    %s114 = sphi 0, %s100
    %s118 = sphi 0, %s118
    %s120 = sphi 0, %s118
    %s121 = sphi 0, %s120
    %s135 = sphi 0, %s121
    %s139 = sphi 0, %s139
    %s141 = sphi 0, %s139
    %s142 = sphi 0, %s141
    %s156 = sphi 0, %s142
    %s160 = sphi 0, %s160
    %s162 = sphi 0, %s160
    %s163 = sphi 0, %s162
    %s177 = sphi 0, %s163
    %s181 = sphi 0, %s181
    %s183 = sphi 0, %s181
    %s184 = sphi 0, %s183
    %s198 = sphi 0, %s184
    %s202 = sphi 0, %s202
    %s204 = sphi 0, %s202
    %s205 = sphi 0, %s204
    %s219 = sphi 0, %s205
    %s223 = sphi 0, %s223
    %s225 = sphi 0, %s223
    %s226 = sphi 0, %s225
    %s240 = sphi 0, %s226
    %s244 = sphi 0, %s244
    %s246 = sphi 0, %s244
    %s247 = sphi 0, %s246
    %s261 = sphi 0, %s247
    %s265 = sphi 0, %s265
    %s267 = sphi 0, %s265
    %s268 = sphi 0, %s267
    %s282 = sphi 0, %s268
    %s288 = sphi 0, %s290
    %s291 = sphi 0, %s288
    %s292 = sphi 0, %s291
    %s308 = sphi 0, %s292
    %s314 = sphi 0, %s316
    %s317 = sphi 0, %s314
    %s318 = sphi 0, %s317
    %s334 = sphi 0, %s318
    %s340 = sphi 0, %s342
    %s343 = sphi 0, %s340
    %s344 = sphi 0, %s343
    %s360 = sphi 0, %s344
  $region4: #{tpu_custom_call.1} parent=0 // loop_header_branch
    %24 = sbr.rel (%p22) target = $region8
  $region5: #{tpu_custom_call.1} parent=0 // loop_body
    %s26 = ssub.s32 %s21, 1
    %s27 = ssub.s32 %s21, 2
    %s28 = sadd.s32 %s21, 1
    %s29 = ssub.s32 %s21, %s28
    %p30 = scmp.eq.s32.totalorder %s29, 0
    %s32 = sadd.s32 %s31, 1
    %s33 = scalar_select %p30, %s31, %s32
    %p36 = pneg %p30
    %p37 = scmp.eq.s32.totalorder %s21, 1
    %p38 = por %p36, %p37
    %p39 = scmp.ne.s32.totalorder %s31, %s34
    %p40 = scmp.eq.s32.totalorder %s21, 0
    %p41 = por %p39, %p40
    %p42 = scmp.ne.s32.totalorder %s31, %s34
    %p43 = scmp.eq.s32.totalorder %s26, 1
    %p44 = por %p42, %p43
    %p45 = scmp.ne.s32.totalorder %s34, %s35
    %p46 = scmp.eq.s32.totalorder %s26, 0
    %p47 = por %p45, %p46
    %p48 = scmp.ne.s32.totalorder %s34, %s35
    %p49 = scmp.eq.s32.totalorder %s27, 1
    %p50 = por %p48, %p49
    %p52 = scmp.ne.s32.totalorder %s35, %s51
    %p53 = scmp.eq.s32.totalorder %s27, 0
    %p54 = por %p52, %p53
    %s56 = sadd.s32 %s55, 1
    %p59 = scmp.eq.s32.totalorder %s21, 1
    %p60 = scmp.ne.s32.totalorder %s55, %s57
    %p61 = scmp.eq.s32.totalorder %s21, 0
    %p62 = por %p60, %p61
    %p63 = scmp.ne.s32.totalorder %s55, %s57
    %p64 = scmp.eq.s32.totalorder %s26, 1
    %p65 = por %p63, %p64
    %p66 = scmp.ne.s32.totalorder %s57, %s58
    %p67 = scmp.eq.s32.totalorder %s26, 0
    %p68 = por %p66, %p67
    %p69 = scmp.ne.s32.totalorder %s57, %s58
    %p70 = scmp.eq.s32.totalorder %s27, 1
    %p71 = por %p69, %p70
    %p73 = scmp.ne.s32.totalorder %s58, %s72
    %p74 = scmp.eq.s32.totalorder %s27, 0
    %p75 = por %p73, %p74
    %s77 = sadd.s32 %s76, 1
    %p80 = scmp.eq.s32.totalorder %s21, 1
    %p81 = scmp.ne.s32.totalorder %s76, %s78
    %p82 = scmp.eq.s32.totalorder %s21, 0
    %p83 = por %p81, %p82
    %p84 = scmp.ne.s32.totalorder %s76, %s78
    %p85 = scmp.eq.s32.totalorder %s26, 1
    %p86 = por %p84, %p85
    %p87 = scmp.ne.s32.totalorder %s78, %s79
    %p88 = scmp.eq.s32.totalorder %s26, 0
    %p89 = por %p87, %p88
    %p90 = scmp.ne.s32.totalorder %s78, %s79
    %p91 = scmp.eq.s32.totalorder %s27, 1
    %p92 = por %p90, %p91
    %p94 = scmp.ne.s32.totalorder %s79, %s93
    %p95 = scmp.eq.s32.totalorder %s27, 0
    %p96 = por %p94, %p95
    %s98 = sadd.s32 %s97, 1
    %p101 = scmp.eq.s32.totalorder %s21, 1
    %p102 = scmp.ne.s32.totalorder %s97, %s99
    %p103 = scmp.eq.s32.totalorder %s21, 0
    %p104 = por %p102, %p103
    %p105 = scmp.ne.s32.totalorder %s97, %s99
    %p106 = scmp.eq.s32.totalorder %s26, 1
    %p107 = por %p105, %p106
    %p108 = scmp.ne.s32.totalorder %s99, %s100
    %p109 = scmp.eq.s32.totalorder %s26, 0
    %p110 = por %p108, %p109
    %p111 = scmp.ne.s32.totalorder %s99, %s100
    %p112 = scmp.eq.s32.totalorder %s27, 1
    %p113 = por %p111, %p112
    %p115 = scmp.ne.s32.totalorder %s100, %s114
    %p116 = scmp.eq.s32.totalorder %s27, 0
    %p117 = por %p115, %p116
    %s119 = sadd.s32 %s118, 1
    %p122 = scmp.eq.s32.totalorder %s21, 1
    %p123 = scmp.ne.s32.totalorder %s118, %s120
    %p124 = scmp.eq.s32.totalorder %s21, 0
    %p125 = por %p123, %p124
    %p126 = scmp.ne.s32.totalorder %s118, %s120
    %p127 = scmp.eq.s32.totalorder %s26, 1
    %p128 = por %p126, %p127
    %p129 = scmp.ne.s32.totalorder %s120, %s121
    %p130 = scmp.eq.s32.totalorder %s26, 0
    %p131 = por %p129, %p130
    %p132 = scmp.ne.s32.totalorder %s120, %s121
    %p133 = scmp.eq.s32.totalorder %s27, 1
    %p134 = por %p132, %p133
    %p136 = scmp.ne.s32.totalorder %s121, %s135
    %p137 = scmp.eq.s32.totalorder %s27, 0
    %p138 = por %p136, %p137
    %s140 = sadd.s32 %s139, 1
    %p143 = scmp.eq.s32.totalorder %s21, 1
    %p144 = scmp.ne.s32.totalorder %s139, %s141
    %p145 = scmp.eq.s32.totalorder %s21, 0
    %p146 = por %p144, %p145
    %p147 = scmp.ne.s32.totalorder %s139, %s141
    %p148 = scmp.eq.s32.totalorder %s26, 1
    %p149 = por %p147, %p148
    %p150 = scmp.ne.s32.totalorder %s141, %s142
    %p151 = scmp.eq.s32.totalorder %s26, 0
    %p152 = por %p150, %p151
    %p153 = scmp.ne.s32.totalorder %s141, %s142
    %p154 = scmp.eq.s32.totalorder %s27, 1
    %p155 = por %p153, %p154
    %p157 = scmp.ne.s32.totalorder %s142, %s156
    %p158 = scmp.eq.s32.totalorder %s27, 0
    %p159 = por %p157, %p158
    %s161 = sadd.s32 %s160, 1
    %p164 = scmp.eq.s32.totalorder %s21, 1
    %p165 = scmp.ne.s32.totalorder %s160, %s162
    %p166 = scmp.eq.s32.totalorder %s21, 0
    %p167 = por %p165, %p166
    %p168 = scmp.ne.s32.totalorder %s160, %s162
    %p169 = scmp.eq.s32.totalorder %s26, 1
    %p170 = por %p168, %p169
    %p171 = scmp.ne.s32.totalorder %s162, %s163
    %p172 = scmp.eq.s32.totalorder %s26, 0
    %p173 = por %p171, %p172
    %p174 = scmp.ne.s32.totalorder %s162, %s163
    %p175 = scmp.eq.s32.totalorder %s27, 1
    %p176 = por %p174, %p175
    %p178 = scmp.ne.s32.totalorder %s163, %s177
    %p179 = scmp.eq.s32.totalorder %s27, 0
    %p180 = por %p178, %p179
    %s182 = sadd.s32 %s181, 1
    %p185 = scmp.eq.s32.totalorder %s21, 1
    %p186 = scmp.ne.s32.totalorder %s181, %s183
    %p187 = scmp.eq.s32.totalorder %s21, 0
    %p188 = por %p186, %p187
    %p189 = scmp.ne.s32.totalorder %s181, %s183
    %p190 = scmp.eq.s32.totalorder %s26, 1
    %p191 = por %p189, %p190
    %p192 = scmp.ne.s32.totalorder %s183, %s184
    %p193 = scmp.eq.s32.totalorder %s26, 0
    %p194 = por %p192, %p193
    %p195 = scmp.ne.s32.totalorder %s183, %s184
    %p196 = scmp.eq.s32.totalorder %s27, 1
    %p197 = por %p195, %p196
    %p199 = scmp.ne.s32.totalorder %s184, %s198
    %p200 = scmp.eq.s32.totalorder %s27, 0
    %p201 = por %p199, %p200
    %s203 = sadd.s32 %s202, 1
    %p206 = scmp.eq.s32.totalorder %s21, 1
    %p207 = scmp.ne.s32.totalorder %s202, %s204
    %p208 = scmp.eq.s32.totalorder %s21, 0
    %p209 = por %p207, %p208
    %p210 = scmp.ne.s32.totalorder %s202, %s204
    %p211 = scmp.eq.s32.totalorder %s26, 1
    %p212 = por %p210, %p211
    %p213 = scmp.ne.s32.totalorder %s204, %s205
    %p214 = scmp.eq.s32.totalorder %s26, 0
    %p215 = por %p213, %p214
    %p216 = scmp.ne.s32.totalorder %s204, %s205
    %p217 = scmp.eq.s32.totalorder %s27, 1
    %p218 = por %p216, %p217
    %p220 = scmp.ne.s32.totalorder %s205, %s219
    %p221 = scmp.eq.s32.totalorder %s27, 0
    %p222 = por %p220, %p221
    %s224 = sadd.s32 %s223, 1
    %p227 = scmp.eq.s32.totalorder %s21, 1
    %p228 = scmp.ne.s32.totalorder %s223, %s225
    %p229 = scmp.eq.s32.totalorder %s21, 0
    %p230 = por %p228, %p229
    %p231 = scmp.ne.s32.totalorder %s223, %s225
    %p232 = scmp.eq.s32.totalorder %s26, 1
    %p233 = por %p231, %p232
    %p234 = scmp.ne.s32.totalorder %s225, %s226
    %p235 = scmp.eq.s32.totalorder %s26, 0
    %p236 = por %p234, %p235
    %p237 = scmp.ne.s32.totalorder %s225, %s226
    %p238 = scmp.eq.s32.totalorder %s27, 1
    %p239 = por %p237, %p238
    %p241 = scmp.ne.s32.totalorder %s226, %s240
    %p242 = scmp.eq.s32.totalorder %s27, 0
    %p243 = por %p241, %p242
    %s245 = sadd.s32 %s244, 1
    %p248 = scmp.eq.s32.totalorder %s21, 1
    %p249 = scmp.ne.s32.totalorder %s244, %s246
    %p250 = scmp.eq.s32.totalorder %s21, 0
    %p251 = por %p249, %p250
    %p252 = scmp.ne.s32.totalorder %s244, %s246
    %p253 = scmp.eq.s32.totalorder %s26, 1
    %p254 = por %p252, %p253
    %p255 = scmp.ne.s32.totalorder %s246, %s247
    %p256 = scmp.eq.s32.totalorder %s26, 0
    %p257 = por %p255, %p256
    %p258 = scmp.ne.s32.totalorder %s246, %s247
    %p259 = scmp.eq.s32.totalorder %s27, 1
    %p260 = por %p258, %p259
    %p262 = scmp.ne.s32.totalorder %s247, %s261
    %p263 = scmp.eq.s32.totalorder %s27, 0
    %p264 = por %p262, %p263
    %s266 = sadd.s32 %s265, 1
    %p269 = scmp.eq.s32.totalorder %s21, 1
    %p270 = scmp.ne.s32.totalorder %s265, %s267
    %p271 = scmp.eq.s32.totalorder %s21, 0
    %p272 = por %p270, %p271
    %p273 = scmp.ne.s32.totalorder %s265, %s267
    %p274 = scmp.eq.s32.totalorder %s26, 1
    %p275 = por %p273, %p274
    %p276 = scmp.ne.s32.totalorder %s267, %s268
    %p277 = scmp.eq.s32.totalorder %s26, 0
    %p278 = por %p276, %p277
    %p279 = scmp.ne.s32.totalorder %s267, %s268
    %p280 = scmp.eq.s32.totalorder %s27, 1
    %p281 = por %p279, %p280
    %p283 = scmp.ne.s32.totalorder %s268, %s282
    %p284 = scmp.eq.s32.totalorder %s27, 0
    %p285 = por %p283, %p284
    %s286 = ssub.s32 %s21, %s28
    %p287 = scmp.eq.s32.totalorder %s286, 0
    %s289 = sadd.s32 %s288, 1
    %s290 = scalar_select %p287, %s288, %s289
    %p293 = pneg %p287
    %p294 = scmp.eq.s32.totalorder %s21, 1
    %p295 = por %p293, %p294
    %p296 = scmp.ne.s32.totalorder %s288, %s291
    %p297 = scmp.eq.s32.totalorder %s21, 0
    %p298 = por %p296, %p297
    %p299 = scmp.ne.s32.totalorder %s288, %s291
    %p300 = scmp.eq.s32.totalorder %s26, 1
    %p301 = por %p299, %p300
    %p302 = scmp.ne.s32.totalorder %s291, %s292
    %p303 = scmp.eq.s32.totalorder %s26, 0
    %p304 = por %p302, %p303
    %p305 = scmp.ne.s32.totalorder %s291, %s292
    %p306 = scmp.eq.s32.totalorder %s27, 1
    %p307 = por %p305, %p306
    %p309 = scmp.ne.s32.totalorder %s292, %s308
    %p310 = scmp.eq.s32.totalorder %s27, 0
    %p311 = por %p309, %p310
    %s312 = ssub.s32 %s21, %s28
    %p313 = scmp.eq.s32.totalorder %s312, 0
    %s315 = sadd.s32 %s314, 1
    %s316 = scalar_select %p313, %s314, %s315
    %p319 = pneg %p313
    %p320 = scmp.eq.s32.totalorder %s21, 1
    %p321 = por %p319, %p320
    %p322 = scmp.ne.s32.totalorder %s314, %s317
    %p323 = scmp.eq.s32.totalorder %s21, 0
    %p324 = por %p322, %p323
    %p325 = scmp.ne.s32.totalorder %s314, %s317
    %p326 = scmp.eq.s32.totalorder %s26, 1
    %p327 = por %p325, %p326
    %p328 = scmp.ne.s32.totalorder %s317, %s318
    %p329 = scmp.eq.s32.totalorder %s26, 0
    %p330 = por %p328, %p329
    %p331 = scmp.ne.s32.totalorder %s317, %s318
    %p332 = scmp.eq.s32.totalorder %s27, 1
    %p333 = por %p331, %p332
    %p335 = scmp.ne.s32.totalorder %s318, %s334
    %p336 = scmp.eq.s32.totalorder %s27, 0
    %p337 = por %p335, %p336
    %s338 = ssub.s32 %s21, %s28
    %p339 = scmp.eq.s32.totalorder %s338, 0
    %s341 = sadd.s32 %s340, 1
    %s342 = scalar_select %p339, %s340, %s341
    %p345 = pneg %p339
    %p346 = scmp.eq.s32.totalorder %s21, 1
    %p347 = por %p345, %p346
    %p348 = scmp.ne.s32.totalorder %s340, %s343
    %p349 = scmp.eq.s32.totalorder %s21, 0
    %p350 = por %p348, %p349
    %p351 = scmp.ne.s32.totalorder %s340, %s343
    %p352 = scmp.eq.s32.totalorder %s26, 1
    %p353 = por %p351, %p352
    %p354 = scmp.ne.s32.totalorder %s343, %s344
    %p355 = scmp.eq.s32.totalorder %s26, 0
    %p356 = por %p354, %p355
    %p357 = scmp.ne.s32.totalorder %s343, %s344
    %p358 = scmp.eq.s32.totalorder %s27, 1
    %p359 = por %p357, %p358
    %p361 = scmp.ne.s32.totalorder %s344, %s360
    %p362 = scmp.eq.s32.totalorder %s27, 0
    %p363 = por %p361, %p362
    %p364 = scmp.le.s32.totalorder 1, %s21
    %p365 = scmp.lt.s32.totalorder %s21, 3
    %p366 = pnand %p364, %p365
    %p367 = pneg %p366
    // Predicated region
    $region9: #{tpu_custom_call.1} parent=5 // pred_check
      _
    $region10: #{tpu_custom_call.1} parent=5 // pred_check_branch
      %369 = sbr.rel (%p366) target = $region12
    $region11: #{tpu_custom_call.1} parent=5 // pred_region
      %s370 = ssub.s32 %s21, 1
      // Predicated region
      $region13: #{tpu_custom_call.1} parent=11 // pred_check
        %p371 = pneg %p68
      $region14: #{tpu_custom_call.1} parent=11 // pred_check_branch
        %373 = sbr.rel (%p371) target = $region16
      $region15: #{tpu_custom_call.1} parent=11 // pred_region
        _
      $region16: #{tpu_custom_call.1} parent=11 // pred_fallthru
        _
      // Predicated region
      $region17: #{tpu_custom_call.1} parent=11 // pred_check
        %p374 = pneg %p89
      $region18: #{tpu_custom_call.1} parent=11 // pred_check_branch
        %376 = sbr.rel (%p374) target = $region20
      $region19: #{tpu_custom_call.1} parent=11 // pred_region
        _
      $region20: #{tpu_custom_call.1} parent=11 // pred_fallthru
        _
      // Predicated region
      $region21: #{tpu_custom_call.1} parent=11 // pred_check
        %p377 = pneg %p110
      $region22: #{tpu_custom_call.1} parent=11 // pred_check_branch
        %379 = sbr.rel (%p377) target = $region24
      $region23: #{tpu_custom_call.1} parent=11 // pred_region
        _
      $region24: #{tpu_custom_call.1} parent=11 // pred_fallthru
        _
      // Predicated region
      $region25: #{tpu_custom_call.1} parent=11 // pred_check
        %p380 = pneg %p131
      $region26: #{tpu_custom_call.1} parent=11 // pred_check_branch
        %382 = sbr.rel (%p380) target = $region28
      $region27: #{tpu_custom_call.1} parent=11 // pred_region
        _
      $region28: #{tpu_custom_call.1} parent=11 // pred_fallthru
        _
      // Predicated region
      $region29: #{tpu_custom_call.1} parent=11 // pred_check
        %p383 = pneg %p152
      $region30: #{tpu_custom_call.1} parent=11 // pred_check_branch
        %385 = sbr.rel (%p383) target = $region32
      $region31: #{tpu_custom_call.1} parent=11 // pred_region
        _
      $region32: #{tpu_custom_call.1} parent=11 // pred_fallthru
        _
      // Predicated region
      $region33: #{tpu_custom_call.1} parent=11 // pred_check
        %p386 = pneg %p173
      $region34: #{tpu_custom_call.1} parent=11 // pred_check_branch
        %388 = sbr.rel (%p386) target = $region36
      $region35: #{tpu_custom_call.1} parent=11 // pred_region
        _
      $region36: #{tpu_custom_call.1} parent=11 // pred_fallthru
        _
      // Predicated region
      $region37: #{tpu_custom_call.1} parent=11 // pred_check
        %p389 = pneg %p194
      $region38: #{tpu_custom_call.1} parent=11 // pred_check_branch
        %391 = sbr.rel (%p389) target = $region40
      $region39: #{tpu_custom_call.1} parent=11 // pred_region
        _
      $region40: #{tpu_custom_call.1} parent=11 // pred_fallthru
        _
      // Predicated region
      $region41: #{tpu_custom_call.1} parent=11 // pred_check
        %p392 = pneg %p215
      $region42: #{tpu_custom_call.1} parent=11 // pred_check_branch
        %394 = sbr.rel (%p392) target = $region44
      $region43: #{tpu_custom_call.1} parent=11 // pred_region
        _
      $region44: #{tpu_custom_call.1} parent=11 // pred_fallthru
        _
      // Predicated region
      $region45: #{tpu_custom_call.1} parent=11 // pred_check
        %p395 = pneg %p236
      $region46: #{tpu_custom_call.1} parent=11 // pred_check_branch
        %397 = sbr.rel (%p395) target = $region48
      $region47: #{tpu_custom_call.1} parent=11 // pred_region
        _
      $region48: #{tpu_custom_call.1} parent=11 // pred_fallthru
        _
      // Predicated region
      $region49: #{tpu_custom_call.1} parent=11 // pred_check
        %p398 = pneg %p257
      $region50: #{tpu_custom_call.1} parent=11 // pred_check_branch
        %400 = sbr.rel (%p398) target = $region52
      $region51: #{tpu_custom_call.1} parent=11 // pred_region
        _
      $region52: #{tpu_custom_call.1} parent=11 // pred_fallthru
        _
      // Predicated region
      $region53: #{tpu_custom_call.1} parent=11 // pred_check
        %p401 = pneg %p278
      $region54: #{tpu_custom_call.1} parent=11 // pred_check_branch
        %403 = sbr.rel (%p401) target = $region56
      $region55: #{tpu_custom_call.1} parent=11 // pred_region
        _
      $region56: #{tpu_custom_call.1} parent=11 // pred_fallthru
        _
    $region12: #{tpu_custom_call.1} parent=5 // pred_fallthru
      _
    %p404 = scmp.lt.s32.totalorder %s21, 2
    // Predicated region
    $region57: #{tpu_custom_call.1} parent=5 // pred_check
      %p405 = pneg %p404
    $region58: #{tpu_custom_call.1} parent=5 // pred_check_branch
      %407 = sbr.rel (%p405) target = $region60
    $region59: #{tpu_custom_call.1} parent=5 // pred_region
      // Predicated region
      $region61: #{tpu_custom_call.1} parent=59 // pred_check
        %p408 = pneg %p41
      $region62: #{tpu_custom_call.1} parent=59 // pred_check_branch
        %410 = sbr.rel (%p408) target = $region64
      $region63: #{tpu_custom_call.1} parent=59 // pred_region
        %s411 = smul.u32 8, %s21
        %p412 = scmp.lt.s32.totalorder %s411, 15
        %s413 = scalar_select %p412, %s411, 15
        %s414 = smul.addr %s413, 8
        %s415 = scalar_lea.vmem %s0, %s414
        %s416 = smul.u32 8, %s21
      $region64: #{tpu_custom_call.1} parent=59 // pred_fallthru
        _
    $region60: #{tpu_custom_call.1} parent=5 // pred_fallthru
      _
    %p417 = scmp.le.s32.totalorder 1, %s21
    %p418 = scmp.lt.s32.totalorder %s21, 3
    %p419 = pnand %p417, %p418
    %p420 = pneg %p419
    // Predicated region
    $region65: #{tpu_custom_call.1} parent=5 // pred_check
      _
    $region66: #{tpu_custom_call.1} parent=5 // pred_check_branch
      %422 = sbr.rel (%p419) target = $region68
    $region67: #{tpu_custom_call.1} parent=5 // pred_region
      %s423 = ssub.s32 %s21, 1
      %s424 = smul.u32 8, %s26
      %p425 = scmp.lt.s32.totalorder %s424, 15
      %s426 = scalar_select %p425, %s424, 15
      %s427 = smul.addr %s426, 8
      %s428 = scalar_lea.vmem %s0, %s427
      %p429 = pneg %p47
      %p430 = pneg %p44
      %p431 = pneg %p68
      %p432 = pneg %p65
      %p433 = pneg %p89
      %p434 = pneg %p86
      %p435 = pneg %p110
      %p436 = pneg %p107
      %p437 = pneg %p131
      %p438 = pneg %p128
      %p439 = pneg %p152
      %p440 = pneg %p149
      %p441 = pneg %p173
      %p442 = pneg %p170
      %p443 = pneg %p194
      %p444 = pneg %p191
      %p445 = pneg %p215
      %p446 = pneg %p212
      %p447 = pneg %p236
      %p448 = pneg %p233
      %p449 = pneg %p257
      %p450 = pneg %p254
      %p451 = pneg %p278
      %p452 = pneg %p275
      %p453 = pneg %p304
      %p454 = pneg %p301
      %s455 = smul.u32 8, %s26
      %p456 = scmp.lt.s32.totalorder %s455, 15
      %s457 = scalar_select %p456, %s455, 15
      %s458 = smul.addr %s457, 8
      %s459 = scalar_lea.vmem %s12, %s458
      %p460 = pneg %p330
      %p461 = pneg %p327
      %s462 = smul.u32 8, %s26
      %p463 = scmp.lt.s32.totalorder %s462, 15
      %s464 = scalar_select %p463, %s462, 15
      %s465 = smul.addr %s464, 8
      %s466 = scalar_lea.vmem %s13, %s465
      %p467 = pneg %p356
      %p468 = pneg %p353
      %s469 = smul.u32 8, %s26
      %p470 = scmp.lt.s32.totalorder %s469, 15
      %s471 = scalar_select %p470, %s469, 15
      %s472 = smul.addr %s471, 8
      %s473 = scalar_lea.vmem %s14, %s472
      %s474 = smul.u32 8, %s26
      %p475 = scmp.lt.s32.totalorder %s474, 15
      %s476 = scalar_select %p475, %s474, 15
      %s477 = smul.addr %s476, 8
      %s478 = scalar_lea.vmem %s0, %s477
      %s479 = smul.u32 8, %s26
      %s480 = smul.u32 8, %s26
      %p481 = scmp.lt.s32.totalorder %s480, 15
      %s482 = scalar_select %p481, %s480, 15
      %s483 = smul.addr %s482, 8
      %s484 = scalar_lea.vmem %s12, %s483
      %s485 = smul.u32 8, %s26
      %s486 = smul.u32 8, %s26
      %p487 = scmp.lt.s32.totalorder %s486, 15
      %s488 = scalar_select %p487, %s486, 15
      %s489 = smul.addr %s488, 8
      %s490 = scalar_lea.vmem %s13, %s489
      %s491 = smul.u32 8, %s26
      %s492 = smul.u32 8, %s26
      %p493 = scmp.lt.s32.totalorder %s492, 15
      %s494 = scalar_select %p493, %s492, 15
      %s495 = smul.addr %s494, 8
      %s496 = scalar_lea.vmem %s14, %s495
      %s497 = smul.u32 8, %s26
      %v498 = vld [vmem:[%s478] sm:$0xff]
      %v499 = vld [vmem:[%s478 + $0x8] sm:$0xff]
      %v500 = vld [vmem:[%s478 + $0x10] sm:$0xff]
      %v501 = vld [vmem:[%s478 + $0x18] sm:$0xff]
      %v502 = vld [vmem:[%s478 + $0x20] sm:$0xff]
      %v503 = vld [vmem:[%s478 + $0x28] sm:$0xff]
      %v504 = vld [vmem:[%s478 + $0x30] sm:$0xff]
      %v505 = vld [vmem:[%s478 + $0x38] sm:$0xff]
      %v506 = vld [vmem:[%s1] sm:$0xff]
      %v507 = vld [vmem:[%s1 + $0x8] sm:$0xff]
      %v508 = vld [vmem:[%s2] sm:$0x1]
      %v510 = vperm.slane %v508, 0
      %vm512 = vcmask 130048
      %v514 = vsel %vm512, %v498, 0
      %v517 = vsel %vm512, %v499, 0
      %v520 = vsel %vm512, %v500, 0
      %v523 = vsel %vm512, %v501, 0
      %v526 = vsel %vm512, %v502, 0
      %v529 = vsel %vm512, %v503, 0
      %v532 = vsel %vm512, %v504, 0
      %v535 = vsel %vm512, %v505, 0
      %537 = vmatpush.msra.mxu0 0.0
      %538 = vmatpush.msra.mxu0 0.0
      %539 = vmatpush.msra.mxu0 0.0
      %540 = vmatpush.msra.mxu0 0.0
      %541 = vmatpush.msra.mxu0 0.0
      %542 = vmatpush.msra.mxu0 0.0
      %543 = vmatpush.msra.mxu0 0.0
      %544 = vmatpush.msra.mxu0 0.0
      %545 = vmatpush.msra.mxu0 0.0
      %546 = vmatpush.msra.mxu0 0.0
      %547 = vmatpush.msra.mxu0 0.0
      %548 = vmatpush.msra.mxu0 0.0
      %549 = vmatpush.msra.mxu0 0.0
      %550 = vmatpush.msra.mxu0 0.0
      %551 = vmatpush.msra.mxu0 %v507
      %552 = vmatpush.msra.mxu0 %v506
      %553 = vmatmul.f32.gmra.mxu0 %v514
      %v554 = vpop.f32.mrf.mxu0
      %v555 = vadd.f32 %v510, %v554
      %556 = vmatmul.f32.gmra.mxu0 %v517
      %v557 = vpop.f32.mrf.mxu0
      %v558 = vadd.f32 %v510, %v557
      %559 = vmatmul.f32.gmra.mxu0 %v520
      %v560 = vpop.f32.mrf.mxu0
      %v561 = vadd.f32 %v510, %v560
      %562 = vmatmul.f32.gmra.mxu0 %v523
      %v563 = vpop.f32.mrf.mxu0
      %v564 = vadd.f32 %v510, %v563
      %565 = vmatmul.f32.gmra.mxu0 %v526
      %v566 = vpop.f32.mrf.mxu0
      %v567 = vadd.f32 %v510, %v566
      %568 = vmatmul.f32.gmra.mxu0 %v529
      %v569 = vpop.f32.mrf.mxu0
      %v570 = vadd.f32 %v510, %v569
      %571 = vmatmul.f32.gmra.mxu0 %v532
      %v572 = vpop.f32.mrf.mxu0
      %v573 = vadd.f32 %v510, %v572
      %574 = vmatmul.f32.gmra.mxu0 %v535
      %v575 = vpop.f32.mrf.mxu0
      %v576 = vadd.f32 %v510, %v575
      %577 = vdwg.mxu0
      %v578 = vmax.f32 %v555, 0.0
      %v579 = vmax.f32 %v558, 0.0
      %v580 = vmax.f32 %v561, 0.0
      %v581 = vmax.f32 %v564, 0.0
      %v582 = vmax.f32 %v567, 0.0
      %v583 = vmax.f32 %v570, 0.0
      %v584 = vmax.f32 %v573, 0.0
      %v585 = vmax.f32 %v576, 0.0
      %v586 = vmin.f32 %v578, 20.0
      %v587 = vmin.f32 %v579, 20.0
      %v588 = vmin.f32 %v580, 20.0
      %v589 = vmin.f32 %v581, 20.0
      %v590 = vmin.f32 %v582, 20.0
      %v591 = vmin.f32 %v583, 20.0
      %v592 = vmin.f32 %v584, 20.0
      %v593 = vmin.f32 %v585, 20.0
      %v594 = vld [vmem:[%s3] sm:$0xff]
      %v595 = vld [vmem:[%s3 + $0x8] sm:$0xff]
      %v596 = vld [vmem:[%s4] sm:$0x1]
      %v598 = vperm.slane %v596, 0
      %600 = vmatpush.msra.mxu0 0.0
      %601 = vmatpush.msra.mxu0 0.0
      %602 = vmatpush.msra.mxu0 0.0
      %603 = vmatpush.msra.mxu0 0.0
      %604 = vmatpush.msra.mxu0 0.0
      %605 = vmatpush.msra.mxu0 0.0
      %606 = vmatpush.msra.mxu0 0.0
      %607 = vmatpush.msra.mxu0 0.0
      %608 = vmatpush.msra.mxu0 0.0
      %609 = vmatpush.msra.mxu0 0.0
      %610 = vmatpush.msra.mxu0 0.0
      %611 = vmatpush.msra.mxu0 0.0
      %612 = vmatpush.msra.mxu0 0.0
      %613 = vmatpush.msra.mxu0 0.0
      %614 = vmatpush.msra.mxu0 %v595
      %615 = vmatpush.msra.mxu0 %v594
      %616 = vmatmul.f32.gmra.mxu0 %v514
      %v617 = vpop.f32.mrf.mxu0
      %v618 = vadd.f32 %v598, %v617
      %619 = vmatmul.f32.gmra.mxu0 %v517
      %v620 = vpop.f32.mrf.mxu0
      %v621 = vadd.f32 %v598, %v620
      %622 = vmatmul.f32.gmra.mxu0 %v520
      %v623 = vpop.f32.mrf.mxu0
      %v624 = vadd.f32 %v598, %v623
      %625 = vmatmul.f32.gmra.mxu0 %v523
      %v626 = vpop.f32.mrf.mxu0
      %v627 = vadd.f32 %v598, %v626
      %628 = vmatmul.f32.gmra.mxu0 %v526
      %v629 = vpop.f32.mrf.mxu0
      %v630 = vadd.f32 %v598, %v629
      %631 = vmatmul.f32.gmra.mxu0 %v529
      %v632 = vpop.f32.mrf.mxu0
      %v633 = vadd.f32 %v598, %v632
      %634 = vmatmul.f32.gmra.mxu0 %v532
      %v635 = vpop.f32.mrf.mxu0
      %v636 = vadd.f32 %v598, %v635
      %637 = vmatmul.f32.gmra.mxu0 %v535
      %v638 = vpop.f32.mrf.mxu0
      %v639 = vadd.f32 %v598, %v638
      %640 = vdwg.mxu0
      %v641 = vmax.f32 %v618, 0.0
      %v642 = vmax.f32 %v621, 0.0
      %v643 = vmax.f32 %v624, 0.0
      %v644 = vmax.f32 %v627, 0.0
      %v645 = vmax.f32 %v630, 0.0
      %v646 = vmax.f32 %v633, 0.0
      %v647 = vmax.f32 %v636, 0.0
      %v648 = vmax.f32 %v639, 0.0
      %v649 = vmin.f32 %v641, 20.0
      %v650 = vmin.f32 %v642, 20.0
      %v651 = vmin.f32 %v643, 20.0
      %v652 = vmin.f32 %v644, 20.0
      %v653 = vmin.f32 %v645, 20.0
      %v654 = vmin.f32 %v646, 20.0
      %v655 = vmin.f32 %v647, 20.0
      %v656 = vmin.f32 %v648, 20.0
      %v657 = vld [vmem:[%s5] sm:$0xff]
      %v658 = vld [vmem:[%s6] sm:$0x1]
      %v660 = vperm.slane %v658, 0
      %vm662 = vcmask 64512
      %v664 = vsel %vm662, %v586, 0
      %v667 = vsel %vm662, %v587, 0
      %v670 = vsel %vm662, %v588, 0
      %v673 = vsel %vm662, %v589, 0
      %v676 = vsel %vm662, %v590, 0
      %v679 = vsel %vm662, %v591, 0
      %v682 = vsel %vm662, %v592, 0
      %v685 = vsel %vm662, %v593, 0
      %687 = vmatpush.msra.mxu0 0.0
      %688 = vmatpush.msra.mxu0 0.0
      %689 = vmatpush.msra.mxu0 0.0
      %690 = vmatpush.msra.mxu0 0.0
      %691 = vmatpush.msra.mxu0 0.0
      %692 = vmatpush.msra.mxu0 0.0
      %693 = vmatpush.msra.mxu0 0.0
      %694 = vmatpush.msra.mxu0 0.0
      %695 = vmatpush.msra.mxu0 0.0
      %696 = vmatpush.msra.mxu0 0.0
      %697 = vmatpush.msra.mxu0 0.0
      %698 = vmatpush.msra.mxu0 0.0
      %699 = vmatpush.msra.mxu0 0.0
      %700 = vmatpush.msra.mxu0 0.0
      %701 = vmatpush.msra.mxu0 0.0
      %702 = vmatpush.msra.mxu0 %v657
      %703 = vmatmul.f32.gmra.mxu0 %v664
      %v704 = vpop.f32.mrf.mxu0
      %v705 = vadd.f32 %v660, %v704
      %706 = vmatmul.f32.gmra.mxu0 %v667
      %v707 = vpop.f32.mrf.mxu0
      %v708 = vadd.f32 %v660, %v707
      %709 = vmatmul.f32.gmra.mxu0 %v670
      %v710 = vpop.f32.mrf.mxu0
      %v711 = vadd.f32 %v660, %v710
      %712 = vmatmul.f32.gmra.mxu0 %v673
      %v713 = vpop.f32.mrf.mxu0
      %v714 = vadd.f32 %v660, %v713
      %715 = vmatmul.f32.gmra.mxu0 %v676
      %v716 = vpop.f32.mrf.mxu0
      %v717 = vadd.f32 %v660, %v716
      %718 = vmatmul.f32.gmra.mxu0 %v679
      %v719 = vpop.f32.mrf.mxu0
      %v720 = vadd.f32 %v660, %v719
      %721 = vmatmul.f32.gmra.mxu0 %v682
      %v722 = vpop.f32.mrf.mxu0
      %v723 = vadd.f32 %v660, %v722
      %724 = vmatmul.f32.gmra.mxu0 %v685
      %v725 = vpop.f32.mrf.mxu0
      %v726 = vadd.f32 %v660, %v725
      %727 = vdwg.mxu0
      %728 = vst.msk [vmem:[%s484] sm:$0xff] %vm512, %v705
      %729 = vst.msk [vmem:[%s484 + $0x8] sm:$0xff] %vm512, %v708
      %730 = vst.msk [vmem:[%s484 + $0x10] sm:$0xff] %vm512, %v711
      %731 = vst.msk [vmem:[%s484 + $0x18] sm:$0xff] %vm512, %v714
      %732 = vst.msk [vmem:[%s484 + $0x20] sm:$0xff] %vm512, %v717
      %733 = vst.msk [vmem:[%s484 + $0x28] sm:$0xff] %vm512, %v720
      %734 = vst.msk [vmem:[%s484 + $0x30] sm:$0xff] %vm512, %v723
      %735 = vst.msk [vmem:[%s484 + $0x38] sm:$0xff] %vm512, %v726
      %v736 = vld [vmem:[%s7] sm:$0xff]
      %v737 = vld [vmem:[%s8] sm:$0x1]
      %v739 = vperm.slane %v737, 0
      %741 = vmatpush.msra.mxu0 0.0
      %742 = vmatpush.msra.mxu0 0.0
      %743 = vmatpush.msra.mxu0 0.0
      %744 = vmatpush.msra.mxu0 0.0
      %745 = vmatpush.msra.mxu0 0.0
      %746 = vmatpush.msra.mxu0 0.0
      %747 = vmatpush.msra.mxu0 0.0
      %748 = vmatpush.msra.mxu0 0.0
      %749 = vmatpush.msra.mxu0 0.0
      %750 = vmatpush.msra.mxu0 0.0
      %751 = vmatpush.msra.mxu0 0.0
      %752 = vmatpush.msra.mxu0 0.0
      %753 = vmatpush.msra.mxu0 0.0
      %754 = vmatpush.msra.mxu0 0.0
      %755 = vmatpush.msra.mxu0 0.0
      %756 = vmatpush.msra.mxu0 %v736
      %757 = vmatmul.f32.gmra.mxu0 %v664
      %v758 = vpop.f32.mrf.mxu0
      %v759 = vadd.f32 %v739, %v758
      %760 = vmatmul.f32.gmra.mxu0 %v667
      %v761 = vpop.f32.mrf.mxu0
      %v762 = vadd.f32 %v739, %v761
      %763 = vmatmul.f32.gmra.mxu0 %v670
      %v764 = vpop.f32.mrf.mxu0
      %v765 = vadd.f32 %v739, %v764
      %766 = vmatmul.f32.gmra.mxu0 %v673
      %v767 = vpop.f32.mrf.mxu0
      %v768 = vadd.f32 %v739, %v767
      %769 = vmatmul.f32.gmra.mxu0 %v676
      %v770 = vpop.f32.mrf.mxu0
      %v771 = vadd.f32 %v739, %v770
      %772 = vmatmul.f32.gmra.mxu0 %v679
      %v773 = vpop.f32.mrf.mxu0
      %v774 = vadd.f32 %v739, %v773
      %775 = vmatmul.f32.gmra.mxu0 %v682
      %v776 = vpop.f32.mrf.mxu0
      %v777 = vadd.f32 %v739, %v776
      %778 = vmatmul.f32.gmra.mxu0 %v685
      %v779 = vpop.f32.mrf.mxu0
      %v780 = vadd.f32 %v739, %v779
      %781 = vdwg.mxu0
      %782 = vst.msk [vmem:[%s490] sm:$0xff] %vm512, %v759
      %783 = vst.msk [vmem:[%s490 + $0x8] sm:$0xff] %vm512, %v762
      %784 = vst.msk [vmem:[%s490 + $0x10] sm:$0xff] %vm512, %v765
      %785 = vst.msk [vmem:[%s490 + $0x18] sm:$0xff] %vm512, %v768
      %786 = vst.msk [vmem:[%s490 + $0x20] sm:$0xff] %vm512, %v771
      %787 = vst.msk [vmem:[%s490 + $0x28] sm:$0xff] %vm512, %v774
      %788 = vst.msk [vmem:[%s490 + $0x30] sm:$0xff] %vm512, %v777
      %789 = vst.msk [vmem:[%s490 + $0x38] sm:$0xff] %vm512, %v780
      %v790 = vld [vmem:[%s9] sm:$0xff]
      %v791 = vld [vmem:[%s10] sm:$0xff]
      %v792 = vld [vmem:[%s10 + $0x8] sm:$0xff]
      %793 = vmatpush.msra.mxu0 0.0
      %794 = vmatpush.msra.mxu0 0.0
      %795 = vmatpush.msra.mxu0 0.0
      %796 = vmatpush.msra.mxu0 0.0
      %797 = vmatpush.msra.mxu0 0.0
      %798 = vmatpush.msra.mxu0 0.0
      %799 = vmatpush.msra.mxu0 0.0
      %800 = vmatpush.msra.mxu0 0.0
      %801 = vmatpush.msra.mxu0 0.0
      %802 = vmatpush.msra.mxu0 0.0
      %803 = vmatpush.msra.mxu0 0.0
      %804 = vmatpush.msra.mxu0 0.0
      %805 = vmatpush.msra.mxu0 0.0
      %806 = vmatpush.msra.mxu0 0.0
      %807 = vmatpush.msra.mxu0 %v792
      %808 = vmatpush.msra.mxu0 %v791
      %809 = vmatmul.f32.gmra.mxu0 %v514
      %v810 = vpop.f32.mrf.mxu0
      %v811 = vadd.f32 0.0, %v810
      %812 = vmatmul.f32.gmra.mxu0 %v517
      %v813 = vpop.f32.mrf.mxu0
      %v814 = vadd.f32 0.0, %v813
      %815 = vmatmul.f32.gmra.mxu0 %v520
      %v816 = vpop.f32.mrf.mxu0
      %v817 = vadd.f32 0.0, %v816
      %818 = vmatmul.f32.gmra.mxu0 %v523
      %v819 = vpop.f32.mrf.mxu0
      %v820 = vadd.f32 0.0, %v819
      %821 = vmatmul.f32.gmra.mxu0 %v526
      %v822 = vpop.f32.mrf.mxu0
      %v823 = vadd.f32 0.0, %v822
      %824 = vmatmul.f32.gmra.mxu0 %v529
      %v825 = vpop.f32.mrf.mxu0
      %v826 = vadd.f32 0.0, %v825
      %827 = vmatmul.f32.gmra.mxu0 %v532
      %v828 = vpop.f32.mrf.mxu0
      %v829 = vadd.f32 0.0, %v828
      %830 = vmatmul.f32.gmra.mxu0 %v535
      %v831 = vpop.f32.mrf.mxu0
      %v832 = vadd.f32 0.0, %v831
      %833 = vdwg.mxu0
      %v835 = vsel %vm662, %v649, 0
      %v838 = vsel %vm662, %v650, 0
      %v841 = vsel %vm662, %v651, 0
      %v844 = vsel %vm662, %v652, 0
      %v847 = vsel %vm662, %v653, 0
      %v850 = vsel %vm662, %v654, 0
      %v853 = vsel %vm662, %v655, 0
      %v856 = vsel %vm662, %v656, 0
      %858 = vmatpush.msra.mxu0 0.0
      %859 = vmatpush.msra.mxu0 0.0
      %860 = vmatpush.msra.mxu0 0.0
      %861 = vmatpush.msra.mxu0 0.0
      %862 = vmatpush.msra.mxu0 0.0
      %863 = vmatpush.msra.mxu0 0.0
      %864 = vmatpush.msra.mxu0 0.0
      %865 = vmatpush.msra.mxu0 0.0
      %866 = vmatpush.msra.mxu0 0.0
      %867 = vmatpush.msra.mxu0 0.0
      %868 = vmatpush.msra.mxu0 0.0
      %869 = vmatpush.msra.mxu0 0.0
      %870 = vmatpush.msra.mxu0 0.0
      %871 = vmatpush.msra.mxu0 0.0
      %872 = vmatpush.msra.mxu0 0.0
      %873 = vmatpush.msra.mxu0 %v790
      %874 = vmatmul.f32.gmra.mxu0 %v835
      %v875 = vpop.f32.mrf.mxu0
      %v876 = vadd.f32 %v811, %v875
      %877 = vmatmul.f32.gmra.mxu0 %v838
      %v878 = vpop.f32.mrf.mxu0
      %v879 = vadd.f32 %v814, %v878
      %880 = vmatmul.f32.gmra.mxu0 %v841
      %v881 = vpop.f32.mrf.mxu0
      %v882 = vadd.f32 %v817, %v881
      %883 = vmatmul.f32.gmra.mxu0 %v844
      %v884 = vpop.f32.mrf.mxu0
      %v885 = vadd.f32 %v820, %v884
      %886 = vmatmul.f32.gmra.mxu0 %v847
      %v887 = vpop.f32.mrf.mxu0
      %v888 = vadd.f32 %v823, %v887
      %889 = vmatmul.f32.gmra.mxu0 %v850
      %v890 = vpop.f32.mrf.mxu0
      %v891 = vadd.f32 %v826, %v890
      %892 = vmatmul.f32.gmra.mxu0 %v853
      %v893 = vpop.f32.mrf.mxu0
      %v894 = vadd.f32 %v829, %v893
      %895 = vmatmul.f32.gmra.mxu0 %v856
      %v896 = vpop.f32.mrf.mxu0
      %v897 = vadd.f32 %v832, %v896
      %898 = vdwg.mxu0
      %v899 = vld [vmem:[%s11] sm:$0x1]
      %v901 = vperm.slane %v899, 0
      %v903 = vadd.f32 %v876, %v901
      %v904 = vadd.f32 %v879, %v901
      %v905 = vadd.f32 %v882, %v901
      %v906 = vadd.f32 %v885, %v901
      %v907 = vadd.f32 %v888, %v901
      %v908 = vadd.f32 %v891, %v901
      %v909 = vadd.f32 %v894, %v901
      %v910 = vadd.f32 %v897, %v901
      %vm911 = vcmask 261120
      %912 = vst.msk [vmem:[%s496] sm:$0xff] %vm911, %v903
      %913 = vst.msk [vmem:[%s496 + $0x8] sm:$0xff] %vm911, %v904
      %914 = vst.msk [vmem:[%s496 + $0x10] sm:$0xff] %vm911, %v905
      %915 = vst.msk [vmem:[%s496 + $0x18] sm:$0xff] %vm911, %v906
      %916 = vst.msk [vmem:[%s496 + $0x20] sm:$0xff] %vm911, %v907
      %917 = vst.msk [vmem:[%s496 + $0x28] sm:$0xff] %vm911, %v908
      %918 = vst.msk [vmem:[%s496 + $0x30] sm:$0xff] %vm911, %v909
      %919 = vst.msk [vmem:[%s496 + $0x38] sm:$0xff] %vm911, %v910
      %s920 = smul.u32 8, %s26
      %p921 = scmp.lt.s32.totalorder %s920, 15
      %s922 = scalar_select %p921, %s920, 15
      %s923 = smul.addr %s922, 8
      %s924 = scalar_lea.vmem %s12, %s923
      %s925 = smul.u32 8, %s26
      %p926 = scmp.lt.s32.totalorder %s925, 15
      %s927 = scalar_select %p926, %s925, 15
      %s928 = smul.addr %s927, 8
      %s929 = scalar_lea.vmem %s13, %s928
      %s930 = smul.u32 8, %s26
      %p931 = scmp.lt.s32.totalorder %s930, 15
      %s932 = scalar_select %p931, %s930, 15
      %s933 = smul.addr %s932, 8
      %s934 = scalar_lea.vmem %s14, %s933
      // Predicated region
      $region69: #{tpu_custom_call.1} parent=67 // pred_check
        %p935 = pneg %p301
      $region70: #{tpu_custom_call.1} parent=67 // pred_check_branch
        %937 = sbr.rel (%p935) target = $region72
      $region71: #{tpu_custom_call.1} parent=67 // pred_region
        %s938 = smul.u32 8, %s26
      $region72: #{tpu_custom_call.1} parent=67 // pred_fallthru
        _
      // Predicated region
      $region73: #{tpu_custom_call.1} parent=67 // pred_check
        %p939 = pneg %p327
      $region74: #{tpu_custom_call.1} parent=67 // pred_check_branch
        %941 = sbr.rel (%p939) target = $region76
      $region75: #{tpu_custom_call.1} parent=67 // pred_region
        %s942 = smul.u32 8, %s26
      $region76: #{tpu_custom_call.1} parent=67 // pred_fallthru
        _
      // Predicated region
      $region77: #{tpu_custom_call.1} parent=67 // pred_check
        %p943 = pneg %p353
      $region78: #{tpu_custom_call.1} parent=67 // pred_check_branch
        %945 = sbr.rel (%p943) target = $region80
      $region79: #{tpu_custom_call.1} parent=67 // pred_region
        %s946 = smul.u32 8, %s26
      $region80: #{tpu_custom_call.1} parent=67 // pred_fallthru
        _
    $region68: #{tpu_custom_call.1} parent=5 // pred_fallthru
      _
    %p947 = scmp.le.s32.totalorder 2, %s21
    // Predicated region
    $region81: #{tpu_custom_call.1} parent=5 // pred_check
      %p948 = pneg %p947
    $region82: #{tpu_custom_call.1} parent=5 // pred_check_branch
      %950 = sbr.rel (%p948) target = $region84
    $region83: #{tpu_custom_call.1} parent=5 // pred_region
      %s951 = ssub.s32 %s21, 2
      // Predicated region
      $region85: #{tpu_custom_call.1} parent=83 // pred_check
        %p952 = pneg %p307
      $region86: #{tpu_custom_call.1} parent=83 // pred_check_branch
        %954 = sbr.rel (%p952) target = $region88
      $region87: #{tpu_custom_call.1} parent=83 // pred_region
        %s955 = smul.u32 8, %s27
        %p956 = scmp.lt.s32.totalorder %s955, 15
        %s957 = scalar_select %p956, %s955, 15
        %s958 = smul.addr %s957, 8
        %s959 = scalar_lea.vmem %s12, %s958
      $region88: #{tpu_custom_call.1} parent=83 // pred_fallthru
        _
      // Predicated region
      $region89: #{tpu_custom_call.1} parent=83 // pred_check
        %p960 = pneg %p333
      $region90: #{tpu_custom_call.1} parent=83 // pred_check_branch
        %962 = sbr.rel (%p960) target = $region92
      $region91: #{tpu_custom_call.1} parent=83 // pred_region
        %s963 = smul.u32 8, %s27
        %p964 = scmp.lt.s32.totalorder %s963, 15
        %s965 = scalar_select %p964, %s963, 15
        %s966 = smul.addr %s965, 8
        %s967 = scalar_lea.vmem %s13, %s966
      $region92: #{tpu_custom_call.1} parent=83 // pred_fallthru
        _
      // Predicated region
      $region93: #{tpu_custom_call.1} parent=83 // pred_check
        %p968 = pneg %p359
      $region94: #{tpu_custom_call.1} parent=83 // pred_check_branch
        %970 = sbr.rel (%p968) target = $region96
      $region95: #{tpu_custom_call.1} parent=83 // pred_region
        %s971 = smul.u32 8, %s27
        %p972 = scmp.lt.s32.totalorder %s971, 15
        %s973 = scalar_select %p972, %s971, 15
        %s974 = smul.addr %s973, 8
        %s975 = scalar_lea.vmem %s14, %s974
      $region96: #{tpu_custom_call.1} parent=83 // pred_fallthru
        _
    $region84: #{tpu_custom_call.1} parent=5 // pred_fallthru
      _
  $region6: #{tpu_custom_call.1} parent=0 // loop_footer
    %s25 = sadd.s32 1, %s21
  $region7: #{tpu_custom_call.1} parent=0 // loop_footer_branch
    %20 = sbr.rel target = $region3
  $region8: #{tpu_custom_call.1} parent=0 // loop_exit
    _

</llo_original>
